<compile_context>
chip_gen: v7x
topology: tpu7x:2x2x1
jax: 0.10.0
libtpu: 0.0.40
codegen_flags: <defaults>
</compile_context>

<pallas_src>
import jax
import jax.numpy as jnp
from jax import lax
from jax.experimental import pallas as pl
from jax.experimental.pallas import tpu as pltpu

# Max batch rows per grid step. f32: 8192*300*4 B ~= 9.8 MiB per input buffer, x2 for
# double-buffering ~= 20 MiB -> under the 32 MiB scoped-VMEM default on v5e/v6e/v7x.
_TB_MAX = 8192
_BATCH_ALIGN = 128  # pad the batch only to this (sublane/lane friendly), not to TB


def _round_up(x, m):
    return ((x + m - 1) // m) * m


def simple_model_kernel(x_ref, wc_ref, bc_ref, wl_ref, bl_ref, o_ref):
    # x_ref : (TB, K=300)  input block, batch-major (streamed / double-buffered)
    # wc_ref: (K, 8)       conv weight, flattened in PyTorch (C,KH,KW) order, transposed
    # bc_ref: (1, 8)       conv bias (row)
    # wl_ref: (1, 8)       linear weight (row)
    # bl_ref: (1, 1)       linear bias (SMEM scalar)
    # o_ref : (TB, 1)      sigmoid output
    # Conv2d(3,8,k=10) on a 10x10 input == a single GEMM (MXU), f32 accumulate.
    h = jnp.dot(x_ref[...], wc_ref[...], preferred_element_type=jnp.float32)  # (TB, 8)
    h = jnp.maximum(h + bc_ref[...], 0.0)                                      # bias + ReLU (VPU)
    # Dropout: eval-mode forward => identity.
    # TODO(synk): training-mode dropout (random mask + 1/(1-p) scaling) not implemented.
    # Linear(8,1): 8-wide weighted sum along lanes (VPU mul + reduce; MXU not needed).
    y = jnp.sum(h * wl_ref[...], axis=1, keepdims=True) + bl_ref[0, 0]         # (TB, 1)
    # Numerically stable sigmoid: exp of a non-positive argument only (EUP slot).
    z = jnp.exp(-jnp.abs(y))
    inv = pl.reciprocal(1.0 + z, approx=False)   # exact recip; EUP has slack anyway
    o_ref[...] = jnp.where(y >= 0.0, inv, z * inv).astype(o_ref.dtype)


def prepare_params(conv_w, conv_b, lin_w, lin_b, param_dtype=jnp.float32):
    """Flatten/transpose PyTorch-layout weights ONCE, outside the per-call path.
    Keep f32 unless the input stream already exists in bf16 upstream -- adding a
    standalone wrapper cast would cost more HBM traffic than it saves."""
    out_ch, c, kh, kw = conv_w.shape                         # (8, 3, 10, 10)
    k = c * kh * kw
    wc = conv_w.reshape(out_ch, k).T.astype(param_dtype)     # (K=300, 8), (C,KH,KW) order
    bc = conv_b.reshape(1, out_ch).astype(jnp.float32)       # (1, 8)
    wl = lin_w.reshape(1, out_ch).astype(jnp.float32)        # (1, 8)
    bl = lin_b.reshape(1, 1).astype(jnp.float32)             # (1, 1) -> SMEM
    return wc, bc, wl, bl


def simple_model_forward(x_nchw, params):
    """x_nchw: (B, 3, 10, 10). Returns (B, 1) float32 == SimpleModel(x) in eval mode."""
    wc, bc, wl, bl = params
    B, C, H, W = x_nchw.shape
    K = C * H * W
    # Batch-major flatten is a free (contiguous) reshape -- NO HBM transpose pass.
    x2d = x_nchw.reshape(B, K)
    if x2d.dtype != wc.dtype:
        x2d = x2d.astype(wc.dtype)  # no-op at the default f32 path

    # Pad batch only to a small alignment, then pick a tile size that (a) stays under
    # _TB_MAX and (b) yields >=2 grid tiles when possible (v7x megacore sharding).
    b_pad = _round_up(B, _BATCH_ALIGN)
    num_tiles = max(1, -(-b_pad // _TB_MAX))            # ceil(b_pad / _TB_MAX)
    if num_tiles == 1 and b_pad >= 2 * _BATCH_ALIGN:
        num_tiles = 2                                    # give both v7x TensorCores work
    tb = _round_up(-(-b_pad // num_tiles), _BATCH_ALIGN)
    b_pad = tb * num_tiles
    if b_pad != B:
        x2d = jnp.pad(x2d, ((0, b_pad - B), (0, 0)))

    cost = pl.CostEstimate(
        flops=2 * b_pad * K * 8 + 4 * b_pad * 8,
        transcendentals=b_pad,
        bytes_accessed=b_pad * K * x2d.dtype.itemsize + b_pad * 4 + K * 8 * 4,
    )

    out = pl.pallas_call(
        simple_model_kernel,
        out_shape=jax.ShapeDtypeStruct((b_pad, 1), jnp.float32),
        grid=(num_tiles,),
        in_specs=[
            pl.BlockSpec((tb, K), lambda i: (i, 0)),            # streamed, double-buffered
            pl.BlockSpec((K, 8), lambda i: (0, 0)),             # resident conv weight
            pl.BlockSpec((1, 8), lambda i: (0, 0)),             # conv bias row
            pl.BlockSpec((1, 8), lambda i: (0, 0)),             # linear weight row
            pl.BlockSpec(memory_space=pltpu.MemorySpace.SMEM),  # linear bias scalar
        ],
        out_specs=pl.BlockSpec((tb, 1), lambda i: (i, 0)),
        compiler_params=pltpu.CompilerParams(
            dimension_semantics=("parallel",),                  # megacore sharding (v7x)
        ),
        cost_estimate=cost,
    )(x2d, wc, bc, wl, bl)

    return out[:B]


if __name__ == "__main__":
    key = jax.random.PRNGKey(0)
    k_x, k_cw, k_cb, k_lw, k_lb = jax.random.split(key, 5)

    # Forward implies a 10x10 spatial input: k=10 VALID conv -> (B,8,1,1) -> Linear(8,1).
    B = 2
    x = jax.random.normal(k_x, (B, 3, 10, 10), dtype=jnp.float32)

    fan_c = 3 * 10 * 10
    bnd_c = 1.0 / fan_c ** 0.5
    conv_w = jax.random.uniform(k_cw, (8, 3, 10, 10), jnp.float32, -bnd_c, bnd_c)
    conv_b = jax.random.uniform(k_cb, (8,), jnp.float32, -bnd_c, bnd_c)
    bnd_l = 1.0 / 8 ** 0.5
    lin_w = jax.random.uniform(k_lw, (1, 8), jnp.float32, -bnd_l, bnd_l)
    lin_b = jax.random.uniform(k_lb, (1,), jnp.float32, -bnd_l, bnd_l)

    params = prepare_params(conv_w, conv_b, lin_w, lin_b, param_dtype=jnp.float32)
    fwd = jax.jit(simple_model_forward)
    out = jax.block_until_ready(fwd(x, params))

    # Pure-JAX reference (PyTorch-equivalent NCHW conv, eval-mode dropout) to validate
    # the (C,KH,KW) flattening order and the fused epilogue.
    ref = lax.conv_general_dilated(
        x, conv_w, window_strides=(1, 1), padding="VALID",
        dimension_numbers=("NCHW", "OIHW", "NCHW"))
    ref = jnp.maximum(ref + conv_b.reshape(1, 8, 1, 1), 0.0).reshape(B, 8)
    ref = jax.nn.sigmoid(ref @ lin_w.T + lin_b)

    assert out.shape == (B, 1), out.shape
    assert bool(jnp.all(jnp.isfinite(out)))
    assert bool(jnp.allclose(out, ref, rtol=5e-3, atol=5e-4)), (out, ref)
    print("KERNEL_OK")
</pallas_src>

<mosaic_0001>
module attributes {stable_mosaic.version = 11 : i64} {
  func.func @simple_model_kernel(%arg0: i32, %arg1: memref<128x300xf32, #tpu.memory_space<vmem>>, %arg2: memref<300x8xf32, #tpu.memory_space<vmem>>, %arg3: memref<1x8xf32, #tpu.memory_space<vmem>>, %arg4: memref<1x8xf32, #tpu.memory_space<vmem>>, %arg5: memref<1x1xf32, #tpu.memory_space<smem>>, %arg6: memref<128x1xf32, #tpu.memory_space<vmem>>) attributes {dimension_semantics = [#tpu.dimension_semantics<parallel>], iteration_bounds = array<i64: 1>, scalar_prefetch = 0 : i64, scratch_operands = 0 : i64, tpu.core_type = #tpu.core_type<tc>, window_params = [{transform_indices = @transform_0, window_bounds = array<i64: 128, 300>}, {pipeline_mode = #tpu.pipeline_mode<synchronous>, transform_indices = @transform_1, window_bounds = array<i64: 300, 8>}, {pipeline_mode = #tpu.pipeline_mode<synchronous>, transform_indices = @transform_2, window_bounds = array<i64: 1, 8>}, {pipeline_mode = #tpu.pipeline_mode<synchronous>, transform_indices = @transform_3, window_bounds = array<i64: 1, 8>}, {transform_indices = @transform_4, window_bounds = array<i64: 1, 1>}, {transform_indices = @transform_5, window_bounds = array<i64: 128, 1>}]} {
    %c0 = arith.constant 0 : index
    %c0_0 = arith.constant 0 : index
    %0 = vector.load %arg1[%c0, %c0_0] : memref<128x300xf32, #tpu.memory_space<vmem>>, vector<128x300xf32>
    %c0_1 = arith.constant 0 : index
    %c0_2 = arith.constant 0 : index
    %1 = vector.load %arg2[%c0_1, %c0_2] : memref<300x8xf32, #tpu.memory_space<vmem>>, vector<300x8xf32>
    %cst = arith.constant dense<0.000000e+00> : vector<128x8xf32>
    %2 = tpu.matmul %0, %1, %cst {dimension_numbers = #tpu.dot_dimension_numbers<[1], [0], [0], [1], [0, 0, 1, 1], [], []>} : vector<128x300xf32>, vector<300x8xf32>, vector<128x8xf32> -> vector<128x8xf32>
    %c0_3 = arith.constant 0 : index
    %c0_4 = arith.constant 0 : index
    %3 = vector.load %arg3[%c0_3, %c0_4] : memref<1x8xf32, #tpu.memory_space<vmem>>, vector<1x8xf32>
    %4 = vector.broadcast %3 : vector<1x8xf32> to vector<128x8xf32>
    %5 = arith.addf %2, %4 : vector<128x8xf32>
    %cst_5 = arith.constant 0.000000e+00 : f32
    %6 = vector.broadcast %cst_5 : f32 to vector<128x8xf32>
    %7 = arith.maximumf %5, %6 : vector<128x8xf32>
    %c0_6 = arith.constant 0 : index
    %c0_7 = arith.constant 0 : index
    %8 = vector.load %arg4[%c0_6, %c0_7] : memref<1x8xf32, #tpu.memory_space<vmem>>, vector<1x8xf32>
    %9 = vector.broadcast %8 : vector<1x8xf32> to vector<128x8xf32>
    %10 = arith.mulf %7, %9 : vector<128x8xf32>
    %cst_8 = arith.constant dense<0.000000e+00> : vector<128xf32>
    %11 = vector.multi_reduction <add>, %10, %cst_8 [1] : vector<128x8xf32> to vector<128xf32>
    %12 = vector.shape_cast %11 : vector<128xf32> to vector<128x1xf32>
    %c0_9 = arith.constant 0 : index
    %c0_10 = arith.constant 0 : index
    %13 = memref.load %arg5[%c0_9, %c0_10] : memref<1x1xf32, #tpu.memory_space<smem>>
    %14 = vector.broadcast %13 : f32 to vector<128x1xf32>
    %15 = arith.addf %12, %14 : vector<128x1xf32>
    %16 = math.absf %15 : vector<128x1xf32>
    %cst_11 = arith.constant 0.000000e+00 : f32
    %17 = vector.broadcast %cst_11 : f32 to vector<128x1xf32>
    %18 = arith.subf %17, %16 : vector<128x1xf32>
    %19 = math.exp %18 : vector<128x1xf32>
    %cst_12 = arith.constant 1.000000e+00 : f32
    %20 = vector.broadcast %cst_12 : f32 to vector<128x1xf32>
    %21 = arith.addf %20, %19 : vector<128x1xf32>
    %22 = tpu.reciprocal %21 : vector<128x1xf32> -> vector<128x1xf32>
    %cst_13 = arith.constant 0.000000e+00 : f32
    %23 = vector.broadcast %cst_13 : f32 to vector<128x1xf32>
    %24 = arith.cmpf oge, %15, %23 : vector<128x1xf32>
    %25 = arith.mulf %19, %22 : vector<128x1xf32>
    %26 = arith.select %24, %22, %25 : vector<128x1xi1>, vector<128x1xf32>
    %c0_14 = arith.constant 0 : index
    %c0_15 = arith.constant 0 : index
    %27 = vector.load %arg6[%c0_14, %c0_15] : memref<128x1xf32, #tpu.memory_space<vmem>>, vector<128x1xf32>
    tpu.vector_store %arg6[%c0_14, %c0_15], %26 {strides = array<i32>} : memref<128x1xf32, #tpu.memory_space<vmem>>, vector<128x1xf32>,
    return
  }
  func.func @transform_0(%arg0: i32) -> (i32, i32) {
    %c0_i32 = arith.constant 0 : i32
    %c0_i32_0 = arith.constant 0 : i32
    return %arg0, %c0_i32 : i32, i32
  }
  func.func @transform_1(%arg0: i32) -> (i32, i32) {
    %c0_i32 = arith.constant 0 : i32
    %c0_i32_0 = arith.constant 0 : i32
    %c0_i32_1 = arith.constant 0 : i32
    return %c0_i32, %c0_i32_0 : i32, i32
  }
  func.func @transform_2(%arg0: i32) -> (i32, i32) {
    %c0_i32 = arith.constant 0 : i32
    %c0_i32_0 = arith.constant 0 : i32
    %c0_i32_1 = arith.constant 0 : i32
    return %c0_i32, %c0_i32_0 : i32, i32
  }
  func.func @transform_3(%arg0: i32) -> (i32, i32) {
    %c0_i32 = arith.constant 0 : i32
    %c0_i32_0 = arith.constant 0 : i32
    %c0_i32_1 = arith.constant 0 : i32
    return %c0_i32, %c0_i32_0 : i32, i32
  }
  func.func @transform_4(%arg0: i32) -> (i32, i32) {
    %c0_i32 = arith.constant 0 : i32
    %c0_i32_0 = arith.constant 0 : i32
    %c0_i32_1 = arith.constant 0 : i32
    return %c0_i32, %c0_i32_0 : i32, i32
  }
  func.func @transform_5(%arg0: i32) -> (i32, i32) {
    %c0_i32 = arith.constant 0 : i32
    %c0_i32_0 = arith.constant 0 : i32
    return %arg0, %c0_i32 : i32, i32
  }
}

</mosaic_0001>

<llo_original>
// kernel: simple_model_forward.1
$region0: #{simple_model_forward.1}
  #allocation0 [shape = 'u32[]', space=smem, size = 0x4, offset = 0x4, fixed_abs, tag = 'smem constant byte address 0x4 - core index']
  #allocation1 [shape = 'u32[144,128]{1,0:T(1,128)}', space=vmem, size = 0x12000, scoped, tag = 'internal scratch']
  #allocation2 [shape = 'f32[1,1]{1,0:T(1,128)S(6)}', space=smem, size = 0x200, scoped, tag = 'scoped memory for simple_model_forward.1']
  %s0 = inlined_call_operand.vmem [shape: f32[128,300], index: 0, kind: input, shape index: {}]
  %s1 = inlined_call_operand.vmem [shape: f32[300,8], index: 1, kind: input, shape index: {}]
  %s2 = inlined_call_operand.vmem [shape: f32[1,8], index: 2, kind: input, shape index: {}]
  %s3 = inlined_call_operand.vmem [shape: f32[1,8], index: 3, kind: input, shape index: {}]
  %s4 = inlined_call_operand.<no memory space> [shape: f32[1,1], index: 4, kind: input, shape index: {}]
  %s5 = inlined_call_operand.vmem [shape: f32[128,1], index: 5, kind: output, shape index: {}]
  %s6 = sld [smem:[#allocation0]]
  $region30: #{simple_model_forward.1} parent=0
    _
  %s8 = ssub.s32 1, %s6
  %s9 = scalar_select 0, %s8, %s6
  %10 = sst [smem:[#allocation2]] %s4
  // Predicated region
  $region2: #{simple_model_forward.1} parent=0 // pred_check
    _
  $region3: #{simple_model_forward.1} parent=0 // pred_check_branch
    %12 = sbr.rel (0) target = $region5
  $region4: #{simple_model_forward.1} parent=0 // pred_region
    _
  $region5: #{simple_model_forward.1} parent=0 // pred_fallthru
    _
  // Predicated region
  $region6: #{simple_model_forward.1} parent=0 // pred_check
    _
  $region7: #{simple_model_forward.1} parent=0 // pred_check_branch
    %14 = sbr.rel (0) target = $region9
  $region8: #{simple_model_forward.1} parent=0 // pred_region
    _
  $region9: #{simple_model_forward.1} parent=0 // pred_fallthru
    _
  // Predicated region
  $region10: #{simple_model_forward.1} parent=0 // pred_check
    _
  $region11: #{simple_model_forward.1} parent=0 // pred_check_branch
    %16 = sbr.rel (0) target = $region13
  $region12: #{simple_model_forward.1} parent=0 // pred_region
    _
  $region13: #{simple_model_forward.1} parent=0 // pred_fallthru
    _
  // Predicated region
  $region14: #{simple_model_forward.1} parent=0 // pred_check
    _
  $region15: #{simple_model_forward.1} parent=0 // pred_check_branch
    %18 = sbr.rel (0) target = $region17
  $region16: #{simple_model_forward.1} parent=0 // pred_region
    _
  $region17: #{simple_model_forward.1} parent=0 // pred_fallthru
    _
  // Predicated region
  $region18: #{simple_model_forward.1} parent=0 // pred_check
    _
  $region19: #{simple_model_forward.1} parent=0 // pred_check_branch
    %20 = sbr.rel (0) target = $region21
  $region20: #{simple_model_forward.1} parent=0 // pred_region
    _
  $region21: #{simple_model_forward.1} parent=0 // pred_fallthru
    _
  %v21 = vld [vmem:[%s0] sm:$0xff]
  %v22 = vld [vmem:[%s0 + $0x8] sm:$0xff]
  %v23 = vld [vmem:[%s0 + $0x10] sm:$0xff]
  %v24 = vld [vmem:[%s0 + $0x18] sm:$0xff]
  %v25 = vld [vmem:[%s0 + $0x20] sm:$0xff]
  %v26 = vld [vmem:[%s0 + $0x28] sm:$0xff]
  %v27 = vld [vmem:[%s0 + $0x30] sm:$0xff]
  %v28 = vld [vmem:[%s0 + $0x38] sm:$0xff]
  %v29 = vld [vmem:[%s0 + $0x40] sm:$0xff]
  %v30 = vld [vmem:[%s0 + $0x48] sm:$0xff]
  %v31 = vld [vmem:[%s0 + $0x50] sm:$0xff]
  %v32 = vld [vmem:[%s0 + $0x58] sm:$0xff]
  %v33 = vld [vmem:[%s0 + $0x60] sm:$0xff]
  %v34 = vld [vmem:[%s0 + $0x68] sm:$0xff]
  %v35 = vld [vmem:[%s0 + $0x70] sm:$0xff]
  %v36 = vld [vmem:[%s0 + $0x78] sm:$0xff]
  %v37 = vld [vmem:[%s0 + $0x80] sm:$0xff]
  %v38 = vld [vmem:[%s0 + $0x88] sm:$0xff]
  %v39 = vld [vmem:[%s0 + $0x90] sm:$0xff]
  %v40 = vld [vmem:[%s0 + $0x98] sm:$0xff]
  %v41 = vld [vmem:[%s0 + $0xa0] sm:$0xff]
  %v42 = vld [vmem:[%s0 + $0xa8] sm:$0xff]
  %v43 = vld [vmem:[%s0 + $0xb0] sm:$0xff]
  %v44 = vld [vmem:[%s0 + $0xb8] sm:$0xff]
  %v45 = vld [vmem:[%s0 + $0xc0] sm:$0xff]
  %v46 = vld [vmem:[%s0 + $0xc8] sm:$0xff]
  %v47 = vld [vmem:[%s0 + $0xd0] sm:$0xff]
  %v48 = vld [vmem:[%s0 + $0xd8] sm:$0xff]
  %v49 = vld [vmem:[%s0 + $0xe0] sm:$0xff]
  %v50 = vld [vmem:[%s0 + $0xe8] sm:$0xff]
  %v51 = vld [vmem:[%s0 + $0xf0] sm:$0xff]
  %v52 = vld [vmem:[%s0 + $0xf8] sm:$0xff]
  %v53 = vld [vmem:[%s0 + $0x100] sm:$0xff]
  %v54 = vld [vmem:[%s0 + $0x108] sm:$0xff]
  %v55 = vld [vmem:[%s0 + $0x110] sm:$0xff]
  %v56 = vld [vmem:[%s0 + $0x118] sm:$0xff]
  %v57 = vld [vmem:[%s0 + $0x120] sm:$0xff]
  %v58 = vld [vmem:[%s0 + $0x128] sm:$0xff]
  %v59 = vld [vmem:[%s0 + $0x130] sm:$0xff]
  %v60 = vld [vmem:[%s0 + $0x138] sm:$0xff]
  %v61 = vld [vmem:[%s0 + $0x140] sm:$0xff]
  %v62 = vld [vmem:[%s0 + $0x148] sm:$0xff]
  %v63 = vld [vmem:[%s0 + $0x150] sm:$0xff]
  %v64 = vld [vmem:[%s0 + $0x158] sm:$0xff]
  %v65 = vld [vmem:[%s0 + $0x160] sm:$0xff]
  %v66 = vld [vmem:[%s0 + $0x168] sm:$0xff]
  %v67 = vld [vmem:[%s0 + $0x170] sm:$0xff]
  %v68 = vld [vmem:[%s0 + $0x178] sm:$0xff]
  %v69 = vld [vmem:[%s1] sm:$0xff]
  %v70 = vld [vmem:[%s1 + $0x8] sm:$0xff]
  %v71 = vld [vmem:[%s1 + $0x10] sm:$0xff]
  %v72 = vld [vmem:[%s1 + $0x18] sm:$0xff]
  %v73 = vld [vmem:[%s1 + $0x20] sm:$0xff]
  %v74 = vld [vmem:[%s1 + $0x28] sm:$0xff]
  %v75 = vld [vmem:[%s1 + $0x30] sm:$0xff]
  %v76 = vld [vmem:[%s1 + $0x38] sm:$0xff]
  %v77 = vld [vmem:[%s1 + $0x40] sm:$0xff]
  %v78 = vld [vmem:[%s1 + $0x48] sm:$0xff]
  %v79 = vld [vmem:[%s1 + $0x50] sm:$0xff]
  %v80 = vld [vmem:[%s1 + $0x58] sm:$0xff]
  %v81 = vld [vmem:[%s1 + $0x60] sm:$0xff]
  %v82 = vld [vmem:[%s1 + $0x68] sm:$0xff]
  %v83 = vld [vmem:[%s1 + $0x70] sm:$0xff]
  %v84 = vld [vmem:[%s1 + $0x78] sm:$0xff]
  %v85 = vld [vmem:[%s1 + $0x80] sm:$0xff]
  %v86 = vld [vmem:[%s1 + $0x88] sm:$0xff]
  %v87 = vld [vmem:[%s1 + $0x90] sm:$0xff]
  %v88 = vld [vmem:[%s1 + $0x98] sm:$0xff]
  %v89 = vld [vmem:[%s1 + $0xa0] sm:$0xff]
  %v90 = vld [vmem:[%s1 + $0xa8] sm:$0xff]
  %v91 = vld [vmem:[%s1 + $0xb0] sm:$0xff]
  %v92 = vld [vmem:[%s1 + $0xb8] sm:$0xff]
  %v93 = vld [vmem:[%s1 + $0xc0] sm:$0xff]
  %v94 = vld [vmem:[%s1 + $0xc8] sm:$0xff]
  %v95 = vld [vmem:[%s1 + $0xd0] sm:$0xff]
  %v96 = vld [vmem:[%s1 + $0xd8] sm:$0xff]
  %v97 = vld [vmem:[%s1 + $0xe0] sm:$0xff]
  %v98 = vld [vmem:[%s1 + $0xe8] sm:$0xff]
  %v99 = vld [vmem:[%s1 + $0xf0] sm:$0xff]
  %v100 = vld [vmem:[%s1 + $0xf8] sm:$0xff]
  %v101 = vld [vmem:[%s1 + $0x100] sm:$0xff]
  %v102 = vld [vmem:[%s1 + $0x108] sm:$0xff]
  %v103 = vld [vmem:[%s1 + $0x110] sm:$0xff]
  %v104 = vld [vmem:[%s1 + $0x118] sm:$0xff]
  %v105 = vld [vmem:[%s1 + $0x120] sm:$0xff]
  %v106 = vld [vmem:[%s1 + $0x128] sm:$0xf]
  %v107 = vld [vmem:[%s2] sm:$0x1]
  %v109 = vlaneseq
  %v110 = vshrl.u32 %v109, 7
  %v111 = vsub.s32 0, %v110
  %v112 = vrot.slane %v107, %v111
  %vm114 = vcmask 359424
  %v116 = vsel %vm114, %v23, 0
  %v119 = vsel %vm114, %v26, 0
  %v122 = vsel %vm114, %v29, 0
  %v125 = vsel %vm114, %v32, 0
  %v128 = vsel %vm114, %v35, 0
  %v131 = vsel %vm114, %v38, 0
  %v134 = vsel %vm114, %v41, 0
  %v137 = vsel %vm114, %v44, 0
  %v140 = vsel %vm114, %v47, 0
  %v143 = vsel %vm114, %v50, 0
  %v146 = vsel %vm114, %v53, 0
  %v149 = vsel %vm114, %v56, 0
  %v152 = vsel %vm114, %v59, 0
  %v155 = vsel %vm114, %v62, 0
  %v158 = vsel %vm114, %v65, 0
  %v161 = vsel %vm114, %v68, 0
  %vm163 = vcmask 1043456
  %v165 = vsel %vm163, %v106, 0
  %167 = vmatprep.subr.mxu0 0.0
  %168 = vmatpush1.msra.mxu0 %v69
  %169 = vmatprep.subr.mxu0 0.0
  %170 = vmatpush1.msra.mxu0 %v70
  %171 = vmatprep.subr.mxu0 0.0
  %172 = vmatpush1.msra.mxu0 %v71
  %173 = vmatprep.subr.mxu0 0.0
  %174 = vmatpush1.msra.mxu0 %v72
  %175 = vmatprep.subr.mxu0 0.0
  %176 = vmatpush1.msra.mxu0 %v73
  %177 = vmatprep.subr.mxu0 0.0
  %178 = vmatpush1.msra.mxu0 %v74
  %179 = vmatprep.subr.mxu0 0.0
  %180 = vmatpush1.msra.mxu0 %v75
  %181 = vmatprep.subr.mxu0 0.0
  %182 = vmatpush1.msra.mxu0 %v76
  %183 = vmatprep.subr.mxu0 0.0
  %184 = vmatpush1.msra.mxu0 %v77
  %185 = vmatprep.subr.mxu0 0.0
  %186 = vmatpush1.msra.mxu0 %v78
  %187 = vmatprep.subr.mxu0 0.0
  %188 = vmatpush1.msra.mxu0 %v79
  %189 = vmatprep.subr.mxu0 0.0
  %190 = vmatpush1.msra.mxu0 %v80
  %191 = vmatprep.subr.mxu0 0.0
  %192 = vmatpush1.msra.mxu0 %v81
  %193 = vmatprep.subr.mxu0 0.0
  %194 = vmatpush1.msra.mxu0 %v82
  %195 = vmatprep.subr.mxu0 0.0
  %196 = vmatpush1.msra.mxu0 %v83
  %197 = vmatprep.subr.mxu0 0.0
  %198 = vmatpush1.msra.mxu0 %v84
  %199 = vmatprep.subr.mxu0 0.0
  %200 = vmatpush1.msra.mxu0 %v85
  %201 = vmatprep.subr.mxu0 0.0
  %202 = vmatpush1.msra.mxu0 %v86
  %203 = vmatprep.subr.mxu0 0.0
  %204 = vmatpush1.msra.mxu0 %v87
  %205 = vmatprep.subr.mxu0 0.0
  %206 = vmatpush1.msra.mxu0 %v88
  %207 = vmatprep.subr.mxu0 0.0
  %208 = vmatpush1.msra.mxu0 %v89
  %209 = vmatprep.subr.mxu0 0.0
  %210 = vmatpush1.msra.mxu0 %v90
  %211 = vmatprep.subr.mxu0 0.0
  %212 = vmatpush1.msra.mxu0 %v91
  %213 = vmatprep.subr.mxu0 0.0
  %214 = vmatpush1.msra.mxu0 %v92
  %215 = vmatprep.subr.mxu0 0.0
  %216 = vmatpush1.msra.mxu0 %v93
  %217 = vmatprep.subr.mxu0 0.0
  %218 = vmatpush1.msra.mxu0 %v94
  %219 = vmatprep.subr.mxu0 0.0
  %220 = vmatpush1.msra.mxu0 %v95
  %221 = vmatprep.subr.mxu0 0.0
  %222 = vmatpush1.msra.mxu0 %v96
  %223 = vmatprep.subr.mxu0 0.0
  %224 = vmatpush1.msra.mxu0 %v97
  %225 = vmatprep.subr.mxu0 0.0
  %226 = vmatpush1.msra.mxu0 %v98
  %227 = vmatprep.subr.mxu0 0.0
  %228 = vmatpush1.msra.mxu0 %v99
  %229 = vmatprep.subr.mxu0 0.0
  %230 = vmatpush1.msra.mxu0 %v100
  %231 = vmatprep.mubr.f32.mxu0 %v22
  %232 = vmatmul.mubr.f32.gmra.mrb[0].mxu0 %v21
  %v233 = vpop.f32.mrb[0].mxu0
  %v234 = vadd.f32 %v112, %v233
  %v235 = vpop.f32.mrb[0].mxu0
  %236 = vmatprep.mubr.f32.mxu0 %v25
  %237 = vmatmul.mubr.f32.gmra.mrb[0].mxu0 %v24
  %v238 = vpop.f32.mrb[0].mxu0
  %v239 = vadd.f32 %v112, %v238
  %v240 = vpop.f32.mrb[0].mxu0
  %241 = vmatprep.mubr.f32.mxu0 %v28
  %242 = vmatmul.mubr.f32.gmra.mrb[0].mxu0 %v27
  %v243 = vpop.f32.mrb[0].mxu0
  %v244 = vadd.f32 %v112, %v243
  %v245 = vpop.f32.mrb[0].mxu0
  %246 = vmatprep.mubr.f32.mxu0 %v31
  %247 = vmatmul.mubr.f32.gmra.mrb[0].mxu0 %v30
  %v248 = vpop.f32.mrb[0].mxu0
  %v249 = vadd.f32 %v112, %v248
  %v250 = vpop.f32.mrb[0].mxu0
  %251 = vmatprep.mubr.f32.mxu0 %v34
  %252 = vmatmul.mubr.f32.gmra.mrb[0].mxu0 %v33
  %v253 = vpop.f32.mrb[0].mxu0
  %v254 = vadd.f32 %v112, %v253
  %v255 = vpop.f32.mrb[0].mxu0
  %256 = vmatprep.mubr.f32.mxu0 %v37
  %257 = vmatmul.mubr.f32.gmra.mrb[0].mxu0 %v36
  %v258 = vpop.f32.mrb[0].mxu0
  %v259 = vadd.f32 %v112, %v258
  %v260 = vpop.f32.mrb[0].mxu0
  %261 = vmatprep.mubr.f32.mxu0 %v40
  %262 = vmatmul.mubr.f32.gmra.mrb[0].mxu0 %v39
  %v263 = vpop.f32.mrb[0].mxu0
  %v264 = vadd.f32 %v112, %v263
  %v265 = vpop.f32.mrb[0].mxu0
  %266 = vmatprep.mubr.f32.mxu0 %v43
  %267 = vmatmul.mubr.f32.gmra.mrb[0].mxu0 %v42
  %v268 = vpop.f32.mrb[0].mxu0
  %v269 = vadd.f32 %v112, %v268
  %v270 = vpop.f32.mrb[0].mxu0
  %271 = vmatprep.mubr.f32.mxu0 %v46
  %272 = vmatmul.mubr.f32.gmra.mrb[0].mxu0 %v45
  %v273 = vpop.f32.mrb[0].mxu0
  %v274 = vadd.f32 %v112, %v273
  %v275 = vpop.f32.mrb[0].mxu0
  %276 = vmatprep.mubr.f32.mxu0 %v49
  %277 = vmatmul.mubr.f32.gmra.mrb[0].mxu0 %v48
  %v278 = vpop.f32.mrb[0].mxu0
  %v279 = vadd.f32 %v112, %v278
  %v280 = vpop.f32.mrb[0].mxu0
  %281 = vmatprep.mubr.f32.mxu0 %v52
  %282 = vmatmul.mubr.f32.gmra.mrb[0].mxu0 %v51
  %v283 = vpop.f32.mrb[0].mxu0
  %v284 = vadd.f32 %v112, %v283
  %v285 = vpop.f32.mrb[0].mxu0
  %286 = vmatprep.mubr.f32.mxu0 %v55
  %287 = vmatmul.mubr.f32.gmra.mrb[0].mxu0 %v54
  %v288 = vpop.f32.mrb[0].mxu0
  %v289 = vadd.f32 %v112, %v288
  %v290 = vpop.f32.mrb[0].mxu0
  %291 = vmatprep.mubr.f32.mxu0 %v58
  %292 = vmatmul.mubr.f32.gmra.mrb[0].mxu0 %v57
  %v293 = vpop.f32.mrb[0].mxu0
  %v294 = vadd.f32 %v112, %v293
  %v295 = vpop.f32.mrb[0].mxu0
  %296 = vmatprep.mubr.f32.mxu0 %v61
  %297 = vmatmul.mubr.f32.gmra.mrb[0].mxu0 %v60
  %v298 = vpop.f32.mrb[0].mxu0
  %v299 = vadd.f32 %v112, %v298
  %v300 = vpop.f32.mrb[0].mxu0
  %301 = vmatprep.mubr.f32.mxu0 %v64
  %302 = vmatmul.mubr.f32.gmra.mrb[0].mxu0 %v63
  %v303 = vpop.f32.mrb[0].mxu0
  %v304 = vadd.f32 %v112, %v303
  %v305 = vpop.f32.mrb[0].mxu0
  %306 = vmatprep.mubr.f32.mxu0 %v67
  %307 = vmatmul.mubr.f32.gmra.mrb[0].mxu0 %v66
  %v308 = vpop.f32.mrb[0].mxu0
  %v309 = vadd.f32 %v112, %v308
  %v310 = vpop.f32.mrb[0].mxu0
  %311 = vdwg.mxu0
  %312 = vmatprep.subr.mxu0 0.0
  %313 = vmatpush1.msra.mxu0 %v101
  %314 = vmatprep.subr.mxu0 0.0
  %315 = vmatpush1.msra.mxu0 %v102
  %316 = vmatprep.subr.mxu0 0.0
  %317 = vmatpush1.msra.mxu0 %v103
  %318 = vmatprep.subr.mxu0 0.0
  %319 = vmatpush1.msra.mxu0 %v104
  %320 = vmatprep.subr.mxu0 0.0
  %321 = vmatpush1.msra.mxu0 %v105
  %322 = vmatprep.subr.mxu0 0.0
  %323 = vmatpush1.msra.mxu0 %v165
  %324 = vmatprep.subr.mxu0 0.0
  %325 = vmatpush1.msra.mxu0 0.0
  %326 = vmatprep.subr.mxu0 0.0
  %327 = vmatpush1.msra.mxu0 0.0
  %328 = vmatprep.subr.mxu0 0.0
  %329 = vmatpush1.msra.mxu0 0.0
  %330 = vmatprep.subr.mxu0 0.0
  %331 = vmatpush1.msra.mxu0 0.0
  %332 = vmatprep.subr.mxu0 0.0
  %333 = vmatpush1.msra.mxu0 0.0
  %334 = vmatprep.subr.mxu0 0.0
  %335 = vmatpush1.msra.mxu0 0.0
  %336 = vmatprep.subr.mxu0 0.0
  %337 = vmatpush1.msra.mxu0 0.0
  %338 = vmatprep.subr.mxu0 0.0
  %339 = vmatpush1.msra.mxu0 0.0
  %340 = vmatprep.subr.mxu0 0.0
  %341 = vmatpush1.msra.mxu0 0.0
  %342 = vmatprep.subr.mxu0 0.0
  %343 = vmatpush1.msra.mxu0 0.0
  %344 = vmatprep.subr.mxu0 0.0
  %345 = vmatpush1.msra.mxu0 0.0
  %346 = vmatprep.subr.mxu0 0.0
  %347 = vmatpush1.msra.mxu0 0.0
  %348 = vmatprep.subr.mxu0 0.0
  %349 = vmatpush1.msra.mxu0 0.0
  %350 = vmatprep.subr.mxu0 0.0
  %351 = vmatpush1.msra.mxu0 0.0
  %352 = vmatprep.subr.mxu0 0.0
  %353 = vmatpush1.msra.mxu0 0.0
  %354 = vmatprep.subr.mxu0 0.0
  %355 = vmatpush1.msra.mxu0 0.0
  %356 = vmatprep.subr.mxu0 0.0
  %357 = vmatpush1.msra.mxu0 0.0
  %358 = vmatprep.subr.mxu0 0.0
  %359 = vmatpush1.msra.mxu0 0.0
  %360 = vmatprep.subr.mxu0 0.0
  %361 = vmatpush1.msra.mxu0 0.0
  %362 = vmatprep.subr.mxu0 0.0
  %363 = vmatpush1.msra.mxu0 0.0
  %364 = vmatprep.subr.mxu0 0.0
  %365 = vmatpush1.msra.mxu0 0.0
  %366 = vmatprep.subr.mxu0 0.0
  %367 = vmatpush1.msra.mxu0 0.0
  %368 = vmatprep.subr.mxu0 0.0
  %369 = vmatpush1.msra.mxu0 0.0
  %370 = vmatprep.subr.mxu0 0.0
  %371 = vmatpush1.msra.mxu0 0.0
  %372 = vmatprep.subr.mxu0 0.0
  %373 = vmatpush1.msra.mxu0 0.0
  %374 = vmatprep.subr.mxu0 0.0
  %375 = vmatpush1.msra.mxu0 0.0
  %376 = vmatprep.mubr.f32.mxu0 0.0
  %377 = vmatmul.mubr.f32.gmra.mrb[0].mxu0 %v116
  %v378 = vpop.f32.mrb[0].mxu0
  %v379 = vadd.f32 %v234, %v378
  %v380 = vpop.f32.mrb[0].mxu0
  %381 = vmatprep.mubr.f32.mxu0 0.0
  %382 = vmatmul.mubr.f32.gmra.mrb[0].mxu0 %v119
  %v383 = vpop.f32.mrb[0].mxu0
  %v384 = vadd.f32 %v239, %v383
  %v385 = vpop.f32.mrb[0].mxu0
  %386 = vmatprep.mubr.f32.mxu0 0.0
  %387 = vmatmul.mubr.f32.gmra.mrb[0].mxu0 %v122
  %v388 = vpop.f32.mrb[0].mxu0
  %v389 = vadd.f32 %v244, %v388
  %v390 = vpop.f32.mrb[0].mxu0
  %391 = vmatprep.mubr.f32.mxu0 0.0
  %392 = vmatmul.mubr.f32.gmra.mrb[0].mxu0 %v125
  %v393 = vpop.f32.mrb[0].mxu0
  %v394 = vadd.f32 %v249, %v393
  %v395 = vpop.f32.mrb[0].mxu0
  %396 = vmatprep.mubr.f32.mxu0 0.0
  %397 = vmatmul.mubr.f32.gmra.mrb[0].mxu0 %v128
  %v398 = vpop.f32.mrb[0].mxu0
  %v399 = vadd.f32 %v254, %v398
  %v400 = vpop.f32.mrb[0].mxu0
  %401 = vmatprep.mubr.f32.mxu0 0.0
  %402 = vmatmul.mubr.f32.gmra.mrb[0].mxu0 %v131
  %v403 = vpop.f32.mrb[0].mxu0
  %v404 = vadd.f32 %v259, %v403
  %v405 = vpop.f32.mrb[0].mxu0
  %406 = vmatprep.mubr.f32.mxu0 0.0
  %407 = vmatmul.mubr.f32.gmra.mrb[0].mxu0 %v134
  %v408 = vpop.f32.mrb[0].mxu0
  %v409 = vadd.f32 %v264, %v408
  %v410 = vpop.f32.mrb[0].mxu0
  %411 = vmatprep.mubr.f32.mxu0 0.0
  %412 = vmatmul.mubr.f32.gmra.mrb[0].mxu0 %v137
  %v413 = vpop.f32.mrb[0].mxu0
  %v414 = vadd.f32 %v269, %v413
  %v415 = vpop.f32.mrb[0].mxu0
  %416 = vmatprep.mubr.f32.mxu0 0.0
  %417 = vmatmul.mubr.f32.gmra.mrb[0].mxu0 %v140
  %v418 = vpop.f32.mrb[0].mxu0
  %v419 = vadd.f32 %v274, %v418
  %v420 = vpop.f32.mrb[0].mxu0
  %421 = vmatprep.mubr.f32.mxu0 0.0
  %422 = vmatmul.mubr.f32.gmra.mrb[0].mxu0 %v143
  %v423 = vpop.f32.mrb[0].mxu0
  %v424 = vadd.f32 %v279, %v423
  %v425 = vpop.f32.mrb[0].mxu0
  %426 = vmatprep.mubr.f32.mxu0 0.0
  %427 = vmatmul.mubr.f32.gmra.mrb[0].mxu0 %v146
  %v428 = vpop.f32.mrb[0].mxu0
  %v429 = vadd.f32 %v284, %v428
  %v430 = vpop.f32.mrb[0].mxu0
  %431 = vmatprep.mubr.f32.mxu0 0.0
  %432 = vmatmul.mubr.f32.gmra.mrb[0].mxu0 %v149
  %v433 = vpop.f32.mrb[0].mxu0
  %v434 = vadd.f32 %v289, %v433
  %v435 = vpop.f32.mrb[0].mxu0
  %436 = vmatprep.mubr.f32.mxu0 0.0
  %437 = vmatmul.mubr.f32.gmra.mrb[0].mxu0 %v152
  %v438 = vpop.f32.mrb[0].mxu0
  %v439 = vadd.f32 %v294, %v438
  %v440 = vpop.f32.mrb[0].mxu0
  %441 = vmatprep.mubr.f32.mxu0 0.0
  %442 = vmatmul.mubr.f32.gmra.mrb[0].mxu0 %v155
  %v443 = vpop.f32.mrb[0].mxu0
  %v444 = vadd.f32 %v299, %v443
  %v445 = vpop.f32.mrb[0].mxu0
  %446 = vmatprep.mubr.f32.mxu0 0.0
  %447 = vmatmul.mubr.f32.gmra.mrb[0].mxu0 %v158
  %v448 = vpop.f32.mrb[0].mxu0
  %v449 = vadd.f32 %v304, %v448
  %v450 = vpop.f32.mrb[0].mxu0
  %451 = vmatprep.mubr.f32.mxu0 0.0
  %452 = vmatmul.mubr.f32.gmra.mrb[0].mxu0 %v161
  %v453 = vpop.f32.mrb[0].mxu0
  %v454 = vadd.f32 %v309, %v453
  %v455 = vpop.f32.mrb[0].mxu0
  %456 = vdwg.mxu0
  %v457 = vmax.f32 %v379, 0.0
  %v458 = vmax.f32 %v384, 0.0
  %v459 = vmax.f32 %v389, 0.0
  %v460 = vmax.f32 %v394, 0.0
  %v461 = vmax.f32 %v399, 0.0
  %v462 = vmax.f32 %v404, 0.0
  %v463 = vmax.f32 %v409, 0.0
  %v464 = vmax.f32 %v414, 0.0
  %v465 = vmax.f32 %v419, 0.0
  %v466 = vmax.f32 %v424, 0.0
  %v467 = vmax.f32 %v429, 0.0
  %v468 = vmax.f32 %v434, 0.0
  %v469 = vmax.f32 %v439, 0.0
  %v470 = vmax.f32 %v444, 0.0
  %v471 = vmax.f32 %v449, 0.0
  %v472 = vmax.f32 %v454, 0.0
  %v473 = vld [vmem:[%s3] sm:$0x1]
  %v475 = vlaneseq
  %v476 = vshrl.u32 %v475, 7
  %v477 = vsub.s32 0, %v476
  %v478 = vrot.slane %v473, %v477
  %v480 = vmul.f32 %v457, %v478
  %v481 = vmul.f32 %v458, %v478
  %v482 = vmul.f32 %v459, %v478
  %v483 = vmul.f32 %v460, %v478
  %v484 = vmul.f32 %v461, %v478
  %v485 = vmul.f32 %v462, %v478
  %v486 = vmul.f32 %v463, %v478
  %v487 = vmul.f32 %v464, %v478
  %v488 = vmul.f32 %v465, %v478
  %v489 = vmul.f32 %v466, %v478
  %v490 = vmul.f32 %v467, %v478
  %v491 = vmul.f32 %v468, %v478
  %v492 = vmul.f32 %v469, %v478
  %v493 = vmul.f32 %v470, %v478
  %v494 = vmul.f32 %v471, %v478
  %v495 = vmul.f32 %v472, %v478
  %vm496 = vcmask 64512
  %v497 = vsel %vm496, %v480, 0.0
  %498 = vadd.xlane.f32.xlu0 %v497
  %v499 = vpop.xlane.xlu0 %498
  %v500 = vsel %vm496, %v481, 0.0
  %501 = vadd.xlane.f32.xlu0 %v500
  %v502 = vpop.xlane.xlu0 %501
  %v503 = vsel %vm496, %v482, 0.0
  %504 = vadd.xlane.f32.xlu0 %v503
  %v505 = vpop.xlane.xlu0 %504
  %v506 = vsel %vm496, %v483, 0.0
  %507 = vadd.xlane.f32.xlu0 %v506
  %v508 = vpop.xlane.xlu0 %507
  %v509 = vsel %vm496, %v484, 0.0
  %510 = vadd.xlane.f32.xlu0 %v509
  %v511 = vpop.xlane.xlu0 %510
  %v512 = vsel %vm496, %v485, 0.0
  %513 = vadd.xlane.f32.xlu0 %v512
  %v514 = vpop.xlane.xlu0 %513
  %v515 = vsel %vm496, %v486, 0.0
  %516 = vadd.xlane.f32.xlu0 %v515
  %v517 = vpop.xlane.xlu0 %516
  %v518 = vsel %vm496, %v487, 0.0
  %519 = vadd.xlane.f32.xlu0 %v518
  %v520 = vpop.xlane.xlu0 %519
  %v521 = vsel %vm496, %v488, 0.0
  %522 = vadd.xlane.f32.xlu0 %v521
  %v523 = vpop.xlane.xlu0 %522
  %v524 = vsel %vm496, %v489, 0.0
  %525 = vadd.xlane.f32.xlu0 %v524
  %v526 = vpop.xlane.xlu0 %525
  %v527 = vsel %vm496, %v490, 0.0
  %528 = vadd.xlane.f32.xlu0 %v527
  %v529 = vpop.xlane.xlu0 %528
  %v530 = vsel %vm496, %v491, 0.0
  %531 = vadd.xlane.f32.xlu0 %v530
  %v532 = vpop.xlane.xlu0 %531
  %v533 = vsel %vm496, %v492, 0.0
  %534 = vadd.xlane.f32.xlu0 %v533
  %v535 = vpop.xlane.xlu0 %534
  %v536 = vsel %vm496, %v493, 0.0
  %537 = vadd.xlane.f32.xlu0 %v536
  %v538 = vpop.xlane.xlu0 %537
  %v539 = vsel %vm496, %v494, 0.0
  %540 = vadd.xlane.f32.xlu0 %v539
  %v541 = vpop.xlane.xlu0 %540
  %v542 = vsel %vm496, %v495, 0.0
  %543 = vadd.xlane.f32.xlu0 %v542
  %v544 = vpop.xlane.xlu0 %543
  %s545 = sld [smem:[#allocation2]]
  %v546 = vstv %s545
  %v547 = vadd.f32 %v499, %v546
  %v548 = vadd.f32 %v502, %v546
  %v549 = vadd.f32 %v505, %v546
  %v550 = vadd.f32 %v508, %v546
  %v551 = vadd.f32 %v511, %v546
  %v552 = vadd.f32 %v514, %v546
  %v553 = vadd.f32 %v517, %v546
  %v554 = vadd.f32 %v520, %v546
  %v555 = vadd.f32 %v523, %v546
  %v556 = vadd.f32 %v526, %v546
  %v557 = vadd.f32 %v529, %v546
  %v558 = vadd.f32 %v532, %v546
  %v559 = vadd.f32 %v535, %v546
  %v560 = vadd.f32 %v538, %v546
  %v561 = vadd.f32 %v541, %v546
  %v562 = vadd.f32 %v544, %v546
  %v563 = vand.u32 2147483647, %v547
  %v564 = vand.u32 2147483647, %v548
  %v565 = vand.u32 2147483647, %v549
  %v566 = vand.u32 2147483647, %v550
  %v567 = vand.u32 2147483647, %v551
  %v568 = vand.u32 2147483647, %v552
  %v569 = vand.u32 2147483647, %v553
  %v570 = vand.u32 2147483647, %v554
  %v571 = vand.u32 2147483647, %v555
  %v572 = vand.u32 2147483647, %v556
  %v573 = vand.u32 2147483647, %v557
  %v574 = vand.u32 2147483647, %v558
  %v575 = vand.u32 2147483647, %v559
  %v576 = vand.u32 2147483647, %v560
  %v577 = vand.u32 2147483647, %v561
  %v578 = vand.u32 2147483647, %v562
  %v579 = vsub.f32 0.0, %v563
  %v580 = vsub.f32 0.0, %v564
  %v581 = vsub.f32 0.0, %v565
  %v582 = vsub.f32 0.0, %v566
  %v583 = vsub.f32 0.0, %v567
  %v584 = vsub.f32 0.0, %v568
  %v585 = vsub.f32 0.0, %v569
  %v586 = vsub.f32 0.0, %v570
  %v587 = vsub.f32 0.0, %v571
  %v588 = vsub.f32 0.0, %v572
  %v589 = vsub.f32 0.0, %v573
  %v590 = vsub.f32 0.0, %v574
  %v591 = vsub.f32 0.0, %v575
  %v592 = vsub.f32 0.0, %v576
  %v593 = vsub.f32 0.0, %v577
  %v594 = vsub.f32 0.0, %v578
  %v595 = vmul.f32 %v579, 1.442695
  %v596 = vpow.pop %v595
  %v597 = vmul.f32 %v580, 1.442695
  %v598 = vpow.pop %v597
  %v599 = vmul.f32 %v581, 1.442695
  %v600 = vpow.pop %v599
  %v601 = vmul.f32 %v582, 1.442695
  %v602 = vpow.pop %v601
  %v603 = vmul.f32 %v583, 1.442695
  %v604 = vpow.pop %v603
  %v605 = vmul.f32 %v584, 1.442695
  %v606 = vpow.pop %v605
  %v607 = vmul.f32 %v585, 1.442695
  %v608 = vpow.pop %v607
  %v609 = vmul.f32 %v586, 1.442695
  %v610 = vpow.pop %v609
  %v611 = vmul.f32 %v587, 1.442695
  %v612 = vpow.pop %v611
  %v613 = vmul.f32 %v588, 1.442695
  %v614 = vpow.pop %v613
  %v615 = vmul.f32 %v589, 1.442695
  %v616 = vpow.pop %v615
  %v617 = vmul.f32 %v590, 1.442695
  %v618 = vpow.pop %v617
  %v619 = vmul.f32 %v591, 1.442695
  %v620 = vpow.pop %v619
  %v621 = vmul.f32 %v592, 1.442695
  %v622 = vpow.pop %v621
  %v623 = vmul.f32 %v593, 1.442695
  %v624 = vpow.pop %v623
  %v625 = vmul.f32 %v594, 1.442695
  %v626 = vpow.pop %v625
  %v627 = vadd.f32 %v596, 1.0
  %v628 = vadd.f32 %v598, 1.0
  %v629 = vadd.f32 %v600, 1.0
  %v630 = vadd.f32 %v602, 1.0
  %v631 = vadd.f32 %v604, 1.0
  %v632 = vadd.f32 %v606, 1.0
  %v633 = vadd.f32 %v608, 1.0
  %v634 = vadd.f32 %v610, 1.0
  %v635 = vadd.f32 %v612, 1.0
  %v636 = vadd.f32 %v614, 1.0
  %v637 = vadd.f32 %v616, 1.0
  %v638 = vadd.f32 %v618, 1.0
  %v639 = vadd.f32 %v620, 1.0
  %v640 = vadd.f32 %v622, 1.0
  %v641 = vadd.f32 %v624, 1.0
  %v642 = vadd.f32 %v626, 1.0
  %v643 = vrcp.pop %v627
  %v644 = vrcp.pop %v628
  %v645 = vrcp.pop %v629
  %v646 = vrcp.pop %v630
  %v647 = vrcp.pop %v631
  %v648 = vrcp.pop %v632
  %v649 = vrcp.pop %v633
  %v650 = vrcp.pop %v634
  %v651 = vrcp.pop %v635
  %v652 = vrcp.pop %v636
  %v653 = vrcp.pop %v637
  %v654 = vrcp.pop %v638
  %v655 = vrcp.pop %v639
  %v656 = vrcp.pop %v640
  %v657 = vrcp.pop %v641
  %v658 = vrcp.pop %v642
  %vm659 = vcmp.ge.f32.partialorder %v547, 0.0
  %vm660 = vcmp.ge.f32.partialorder %v548, 0.0
  %vm661 = vcmp.ge.f32.partialorder %v549, 0.0
  %vm662 = vcmp.ge.f32.partialorder %v550, 0.0
  %vm663 = vcmp.ge.f32.partialorder %v551, 0.0
  %vm664 = vcmp.ge.f32.partialorder %v552, 0.0
  %vm665 = vcmp.ge.f32.partialorder %v553, 0.0
  %vm666 = vcmp.ge.f32.partialorder %v554, 0.0
  %vm667 = vcmp.ge.f32.partialorder %v555, 0.0
  %vm668 = vcmp.ge.f32.partialorder %v556, 0.0
  %vm669 = vcmp.ge.f32.partialorder %v557, 0.0
  %vm670 = vcmp.ge.f32.partialorder %v558, 0.0
  %vm671 = vcmp.ge.f32.partialorder %v559, 0.0
  %vm672 = vcmp.ge.f32.partialorder %v560, 0.0
  %vm673 = vcmp.ge.f32.partialorder %v561, 0.0
  %vm674 = vcmp.ge.f32.partialorder %v562, 0.0
  %v675 = vmul.f32 %v596, %v643
  %v676 = vmul.f32 %v598, %v644
  %v677 = vmul.f32 %v600, %v645
  %v678 = vmul.f32 %v602, %v646
  %v679 = vmul.f32 %v604, %v647
  %v680 = vmul.f32 %v606, %v648
  %v681 = vmul.f32 %v608, %v649
  %v682 = vmul.f32 %v610, %v650
  %v683 = vmul.f32 %v612, %v651
  %v684 = vmul.f32 %v614, %v652
  %v685 = vmul.f32 %v616, %v653
  %v686 = vmul.f32 %v618, %v654
  %v687 = vmul.f32 %v620, %v655
  %v688 = vmul.f32 %v622, %v656
  %v689 = vmul.f32 %v624, %v657
  %v690 = vmul.f32 %v626, %v658
  %v691 = vsel %vm659, %v643, %v675
  %v692 = vsel %vm660, %v644, %v676
  %v693 = vsel %vm661, %v645, %v677
  %v694 = vsel %vm662, %v646, %v678
  %v695 = vsel %vm663, %v647, %v679
  %v696 = vsel %vm664, %v648, %v680
  %v697 = vsel %vm665, %v649, %v681
  %v698 = vsel %vm666, %v650, %v682
  %v699 = vsel %vm667, %v651, %v683
  %v700 = vsel %vm668, %v652, %v684
  %v701 = vsel %vm669, %v653, %v685
  %v702 = vsel %vm670, %v654, %v686
  %v703 = vsel %vm671, %v655, %v687
  %v704 = vsel %vm672, %v656, %v688
  %v705 = vsel %vm673, %v657, %v689
  %v706 = vsel %vm674, %v658, %v690
  %vm707 = vcmask 7168
  %708 = vst.msk [vmem:[%s5] sm:$0xff] %vm707, %v691
  %709 = vst.msk [vmem:[%s5 + $0x8] sm:$0xff] %vm707, %v692
  %710 = vst.msk [vmem:[%s5 + $0x10] sm:$0xff] %vm707, %v693
  %711 = vst.msk [vmem:[%s5 + $0x18] sm:$0xff] %vm707, %v694
  %712 = vst.msk [vmem:[%s5 + $0x20] sm:$0xff] %vm707, %v695
  %713 = vst.msk [vmem:[%s5 + $0x28] sm:$0xff] %vm707, %v696
  %714 = vst.msk [vmem:[%s5 + $0x30] sm:$0xff] %vm707, %v697
  %715 = vst.msk [vmem:[%s5 + $0x38] sm:$0xff] %vm707, %v698
  %716 = vst.msk [vmem:[%s5 + $0x40] sm:$0xff] %vm707, %v699
  %717 = vst.msk [vmem:[%s5 + $0x48] sm:$0xff] %vm707, %v700
  %718 = vst.msk [vmem:[%s5 + $0x50] sm:$0xff] %vm707, %v701
  %719 = vst.msk [vmem:[%s5 + $0x58] sm:$0xff] %vm707, %v702
  %720 = vst.msk [vmem:[%s5 + $0x60] sm:$0xff] %vm707, %v703
  %721 = vst.msk [vmem:[%s5 + $0x68] sm:$0xff] %vm707, %v704
  %722 = vst.msk [vmem:[%s5 + $0x70] sm:$0xff] %vm707, %v705
  %723 = vst.msk [vmem:[%s5 + $0x78] sm:$0xff] %vm707, %v706
  // Predicated region
  $region22: #{simple_model_forward.1} parent=0 // pred_check
    _
  $region23: #{simple_model_forward.1} parent=0 // pred_check_branch
    %725 = sbr.rel (0) target = $region25
  $region24: #{simple_model_forward.1} parent=0 // pred_region
    _
  $region25: #{simple_model_forward.1} parent=0 // pred_fallthru
    _
  // Predicated region
  $region26: #{simple_model_forward.1} parent=0 // pred_check
    _
  $region27: #{simple_model_forward.1} parent=0 // pred_check_branch
    %727 = sbr.rel (0) target = $region29
  $region28: #{simple_model_forward.1} parent=0 // pred_region
    _
  $region29: #{simple_model_forward.1} parent=0 // pred_fallthru
    _

</llo_original>
